<compile_context>
chip_gen: v7x
topology: tpu7x:2x2x1
jax: 0.10.0
libtpu: 0.0.40
codegen_flags: <defaults>
</compile_context>

<pallas_src>
import functools

import jax
import jax.numpy as jnp
from jax import lax
from jax.experimental import pallas as pl
from jax.experimental.pallas import tpu as pltpu  # noqa: F401  (kept for parity / future use)


def _round_up(n: int, m: int) -> int:
    return ((n + m - 1) // m) * m


# ----------------------------- Pallas kernel --------------------------------

def _build_kernel(T, Bp, U, H, Y, Tf, offsets):
    """Builds the fused Elman rollout + affine decoder kernel.

    The single input is a packed, lane-dense (total_rows, 128) f32 slab; static
    offsets (Python ints, closed over) carve out each operand.
    """
    o_x, o_wih, o_whh, o_b, o_h0, o_a, o_bo = offsets

    def kernel(slab_ref, fc_ref):
        x = slab_ref[o_x:o_x + T * Bp, 0:U]          # (T*Bp, U)  past features, time-major
        wih = slab_ref[o_wih:o_wih + U, 0:H]          # (U, H)     W_ih^T
        whh = slab_ref[o_whh:o_whh + H, 0:H]          # (H, H)     W_hh^T
        b = slab_ref[o_b:o_b + Bp, 0:H]               # (Bp, H)    b_ih + b_hh, replicated rows
        h0 = slab_ref[o_h0:o_h0 + Bp, 0:H]            # (Bp, H)    init state broadcast
        a = slab_ref[o_a:o_a + H, 0:Y]                # (H, Y)     A^T
        bo = slab_ref[o_bo:o_bo + 1, 0:Y]             # (1, Y)     decoder bias

        # Hoisted input projection: one (T*Bp,U)@(U,H) matmul off the serial chain.
        xw = jnp.dot(x, wih, preferred_element_type=jnp.float32)   # (T*Bp, H)

        # Past horizon: serial recurrence, fully unrolled (T static & small).
        # Each per-step row slice is a full aligned sublane tile (Bp == 8k).
        h = h0
        for t in range(T):
            h = jnp.tanh(xw[t * Bp:(t + 1) * Bp, :] + b
                         + jnp.dot(h, whh, preferred_element_type=jnp.float32))

        # Forecast horizon: inputs are all-zero, only the bias contributes.
        # States stay register-resident (no VMEM scratch round-trip).
        states = []
        for _ in range(Tf):
            h = jnp.tanh(b + jnp.dot(h, whh, preferred_element_type=jnp.float32))
            states.append(h)
        s = jnp.concatenate(states, axis=0)           # (Tf*Bp, H)

        # Fused affine decoder over all future states; single bulk store.
        fc_ref[...] = jnp.dot(s, a, preferred_element_type=jnp.float32) + bo

    return kernel


# ------------------------------ wrapper --------------------------------------

@functools.partial(jax.jit, static_argnums=(2,))
def rnn_recursive_forward(features_past, params, forecast_horizon):
    T, B, U = features_past.shape
    H = params["w_hh_t"].shape[0]
    Y = params["a_t"].shape[1]
    Tf = forecast_horizon
    assert U <= 128 and H <= 128 and Y <= 128

    f32 = jnp.float32
    Bp = _round_up(max(B, 1), 8)                      # pad batch to a full sublane tile

    # Packed-slab layout: every region's row count is a multiple of 8; 128 lanes wide.
    rows_x = T * Bp
    rows_wih = _round_up(U, 8)
    rows_whh = _round_up(H, 8)
    rows_b = Bp
    rows_h0 = Bp
    rows_a = _round_up(H, 8)
    rows_bo = 8
    o_x = 0
    o_wih = o_x + rows_x
    o_whh = o_wih + rows_wih
    o_b = o_whh + rows_whh
    o_h0 = o_b + rows_b
    o_a = o_h0 + rows_h0
    o_bo = o_a + rows_a
    total_rows = o_bo + rows_bo

    # Batch padding (zeros) + time-major flattening; all wrapper-side layout plumbing.
    x_pad = jnp.zeros((T, Bp, U), f32).at[:, :B, :].set(features_past.astype(f32))
    b_comb = (params["b_ih"] + params["b_hh"]).astype(f32).reshape(1, H)

    slab = jnp.zeros((total_rows, 128), f32)
    slab = slab.at[o_x:o_x + T * Bp, 0:U].set(x_pad.reshape(T * Bp, U))
    slab = slab.at[o_wih:o_wih + U, 0:H].set(params["w_ih_t"].astype(f32))
    slab = slab.at[o_whh:o_whh + H, 0:H].set(params["w_hh_t"].astype(f32))
    slab = slab.at[o_b:o_b + Bp, 0:H].set(jnp.broadcast_to(b_comb, (Bp, H)))
    slab = slab.at[o_h0:o_h0 + Bp, 0:H].set(
        jnp.broadcast_to(params["h0"].astype(f32), (Bp, H)))
    slab = slab.at[o_a:o_a + H, 0:Y].set(params["a_t"].astype(f32))
    slab = slab.at[o_bo, 0:Y].set(params["b_out"].astype(f32))

    kernel = _build_kernel(T, Bp, U, H, Y, Tf,
                           (o_x, o_wih, o_whh, o_b, o_h0, o_a, o_bo))

    fc = pl.pallas_call(
        kernel,
        out_shape=jax.ShapeDtypeStruct((Tf * Bp, Y), f32),
    )(slab)

    # Drop padded batch rows; cheap metadata/slice on the host-graph side.
    return fc.reshape(Tf, Bp, Y)[:, :B, :]


# --------------------------- pure-JAX reference ------------------------------

def reference_forward(features_past, params, forecast_horizon):
    T, B, U = features_past.shape
    H = params["w_hh_t"].shape[0]
    zeros_future = jnp.zeros((forecast_horizon, B, U), features_past.dtype)
    features = jnp.concatenate([features_past, zeros_future], axis=0)
    h0 = jnp.broadcast_to(params["h0"], (B, H))
    b = params["b_ih"] + params["b_hh"]

    def step(h, x):
        h_new = jnp.tanh(x @ params["w_ih_t"] + h @ params["w_hh_t"] + b)
        return h_new, h_new

    _, states = lax.scan(step, h0, features)
    future = states[-forecast_horizon:]
    return future @ params["a_t"] + params["b_out"]


# --------------------------------- main --------------------------------------

if __name__ == "__main__":
    T = 8                 # past horizon (seq len)
    B = 2                 # batch
    n_features_U = 4
    n_state_neurons = 32
    n_features_Y = 2
    forecast_horizon = 4

    key = jax.random.PRNGKey(0)
    k_x, k_wih, k_whh, k_bih, k_bhh, k_a, k_bo, k_h0 = jax.random.split(key, 8)

    # PyTorch-style init: U(-1/sqrt(H), 1/sqrt(H)) for RNN & Linear weights,
    # torch.rand-style U(0,1) for init_state. Deterministic from PRNGKey(0).
    H = n_state_neurons
    bound_rnn = 1.0 / jnp.sqrt(H)
    bound_lin = 1.0 / jnp.sqrt(H)
    params = {
        # stored pre-transposed: x @ W_ih^T == x @ w_ih_t
        "w_ih_t": jax.random.uniform(k_wih, (n_features_U, H), jnp.float32,
                                     -bound_rnn, bound_rnn),
        "w_hh_t": jax.random.uniform(k_whh, (H, H), jnp.float32,
                                     -bound_rnn, bound_rnn),
        "b_ih": jax.random.uniform(k_bih, (H,), jnp.float32, -bound_rnn, bound_rnn),
        "b_hh": jax.random.uniform(k_bhh, (H,), jnp.float32, -bound_rnn, bound_rnn),
        "a_t": jax.random.uniform(k_a, (H, n_features_Y), jnp.float32,
                                  -bound_lin, bound_lin),
        "b_out": jax.random.uniform(k_bo, (n_features_Y,), jnp.float32,
                                    -bound_lin, bound_lin),
        "h0": jax.random.uniform(k_h0, (1, H), jnp.float32, 0.0, 1.0),
    }

    features_past = jax.random.normal(k_x, (T, B, n_features_U), jnp.float32)

    forecast = rnn_recursive_forward(features_past, params, forecast_horizon)
    forecast = jax.block_until_ready(forecast)

    expected = reference_forward(features_past, params, forecast_horizon)
    assert forecast.shape == (forecast_horizon, B, n_features_Y), forecast.shape
    assert jnp.allclose(forecast, expected, rtol=1e-5, atol=1e-4), (
        jnp.max(jnp.abs(forecast - expected)))

    print("KERNEL_OK")
</pallas_src>

<mosaic_0001>
module attributes {stable_mosaic.version = 11 : i64} {
  func.func @kernel(%arg0: memref<160x128xf32, #tpu.memory_space<vmem>>, %arg1: memref<32x2xf32, #tpu.memory_space<vmem>>) attributes {dimension_semantics = [], scalar_prefetch = 0 : i64, scratch_operands = 0 : i64, tpu.core_type = #tpu.core_type<tc>} {
    %c0 = arith.constant 0 : index
    %c0_0 = arith.constant 0 : index
    %0 = vector.load %arg0[%c0, %c0_0] : memref<160x128xf32, #tpu.memory_space<vmem>>, vector<64x4xf32>
    %c64 = arith.constant 64 : index
    %c0_1 = arith.constant 0 : index
    %1 = vector.load %arg0[%c64, %c0_1] : memref<160x128xf32, #tpu.memory_space<vmem>>, vector<4x32xf32>
    %c72 = arith.constant 72 : index
    %c0_2 = arith.constant 0 : index
    %2 = vector.load %arg0[%c72, %c0_2] : memref<160x128xf32, #tpu.memory_space<vmem>>, vector<32x32xf32>
    %c104 = arith.constant 104 : index
    %c0_3 = arith.constant 0 : index
    %3 = vector.load %arg0[%c104, %c0_3] : memref<160x128xf32, #tpu.memory_space<vmem>>, vector<8x32xf32>
    %c112 = arith.constant 112 : index
    %c0_4 = arith.constant 0 : index
    %4 = vector.load %arg0[%c112, %c0_4] : memref<160x128xf32, #tpu.memory_space<vmem>>, vector<8x32xf32>
    %c120 = arith.constant 120 : index
    %c0_5 = arith.constant 0 : index
    %5 = vector.load %arg0[%c120, %c0_5] : memref<160x128xf32, #tpu.memory_space<vmem>>, vector<32x2xf32>
    %c152 = arith.constant 152 : index
    %c0_6 = arith.constant 0 : index
    %6 = vector.load %arg0[%c152, %c0_6] : memref<160x128xf32, #tpu.memory_space<vmem>>, vector<1x2xf32>
    %cst = arith.constant dense<0.000000e+00> : vector<64x32xf32>
    %7 = tpu.matmul %0, %1, %cst {dimension_numbers = #tpu.dot_dimension_numbers<[1], [0], [0], [1], [0, 0, 1, 1], [], []>} : vector<64x4xf32>, vector<4x32xf32>, vector<64x32xf32> -> vector<64x32xf32>
    %8 = vector.extract_strided_slice %7 {offsets = [0, 0], sizes = [8, 32], strides = [1, 1]} : vector<64x32xf32> to vector<8x32xf32>
    %9 = arith.addf %8, %3 : vector<8x32xf32>
    %cst_7 = arith.constant dense<0.000000e+00> : vector<8x32xf32>
    %10 = tpu.matmul %4, %2, %cst_7 {dimension_numbers = #tpu.dot_dimension_numbers<[1], [0], [0], [1], [0, 0, 1, 1], [], []>} : vector<8x32xf32>, vector<32x32xf32>, vector<8x32xf32> -> vector<8x32xf32>
    %11 = arith.addf %9, %10 : vector<8x32xf32>
    %12 = math.tanh %11 : vector<8x32xf32>
    %13 = vector.extract_strided_slice %7 {offsets = [8, 0], sizes = [8, 32], strides = [1, 1]} : vector<64x32xf32> to vector<8x32xf32>
    %14 = arith.addf %13, %3 : vector<8x32xf32>
    %cst_8 = arith.constant dense<0.000000e+00> : vector<8x32xf32>
    %15 = tpu.matmul %12, %2, %cst_8 {dimension_numbers = #tpu.dot_dimension_numbers<[1], [0], [0], [1], [0, 0, 1, 1], [], []>} : vector<8x32xf32>, vector<32x32xf32>, vector<8x32xf32> -> vector<8x32xf32>
    %16 = arith.addf %14, %15 : vector<8x32xf32>
    %17 = math.tanh %16 : vector<8x32xf32>
    %18 = vector.extract_strided_slice %7 {offsets = [16, 0], sizes = [8, 32], strides = [1, 1]} : vector<64x32xf32> to vector<8x32xf32>
    %19 = arith.addf %18, %3 : vector<8x32xf32>
    %cst_9 = arith.constant dense<0.000000e+00> : vector<8x32xf32>
    %20 = tpu.matmul %17, %2, %cst_9 {dimension_numbers = #tpu.dot_dimension_numbers<[1], [0], [0], [1], [0, 0, 1, 1], [], []>} : vector<8x32xf32>, vector<32x32xf32>, vector<8x32xf32> -> vector<8x32xf32>
    %21 = arith.addf %19, %20 : vector<8x32xf32>
    %22 = math.tanh %21 : vector<8x32xf32>
    %23 = vector.extract_strided_slice %7 {offsets = [24, 0], sizes = [8, 32], strides = [1, 1]} : vector<64x32xf32> to vector<8x32xf32>
    %24 = arith.addf %23, %3 : vector<8x32xf32>
    %cst_10 = arith.constant dense<0.000000e+00> : vector<8x32xf32>
    %25 = tpu.matmul %22, %2, %cst_10 {dimension_numbers = #tpu.dot_dimension_numbers<[1], [0], [0], [1], [0, 0, 1, 1], [], []>} : vector<8x32xf32>, vector<32x32xf32>, vector<8x32xf32> -> vector<8x32xf32>
    %26 = arith.addf %24, %25 : vector<8x32xf32>
    %27 = math.tanh %26 : vector<8x32xf32>
    %28 = vector.extract_strided_slice %7 {offsets = [32, 0], sizes = [8, 32], strides = [1, 1]} : vector<64x32xf32> to vector<8x32xf32>
    %29 = arith.addf %28, %3 : vector<8x32xf32>
    %cst_11 = arith.constant dense<0.000000e+00> : vector<8x32xf32>
    %30 = tpu.matmul %27, %2, %cst_11 {dimension_numbers = #tpu.dot_dimension_numbers<[1], [0], [0], [1], [0, 0, 1, 1], [], []>} : vector<8x32xf32>, vector<32x32xf32>, vector<8x32xf32> -> vector<8x32xf32>
    %31 = arith.addf %29, %30 : vector<8x32xf32>
    %32 = math.tanh %31 : vector<8x32xf32>
    %33 = vector.extract_strided_slice %7 {offsets = [40, 0], sizes = [8, 32], strides = [1, 1]} : vector<64x32xf32> to vector<8x32xf32>
    %34 = arith.addf %33, %3 : vector<8x32xf32>
    %cst_12 = arith.constant dense<0.000000e+00> : vector<8x32xf32>
    %35 = tpu.matmul %32, %2, %cst_12 {dimension_numbers = #tpu.dot_dimension_numbers<[1], [0], [0], [1], [0, 0, 1, 1], [], []>} : vector<8x32xf32>, vector<32x32xf32>, vector<8x32xf32> -> vector<8x32xf32>
    %36 = arith.addf %34, %35 : vector<8x32xf32>
    %37 = math.tanh %36 : vector<8x32xf32>
    %38 = vector.extract_strided_slice %7 {offsets = [48, 0], sizes = [8, 32], strides = [1, 1]} : vector<64x32xf32> to vector<8x32xf32>
    %39 = arith.addf %38, %3 : vector<8x32xf32>
    %cst_13 = arith.constant dense<0.000000e+00> : vector<8x32xf32>
    %40 = tpu.matmul %37, %2, %cst_13 {dimension_numbers = #tpu.dot_dimension_numbers<[1], [0], [0], [1], [0, 0, 1, 1], [], []>} : vector<8x32xf32>, vector<32x32xf32>, vector<8x32xf32> -> vector<8x32xf32>
    %41 = arith.addf %39, %40 : vector<8x32xf32>
    %42 = math.tanh %41 : vector<8x32xf32>
    %43 = vector.extract_strided_slice %7 {offsets = [56, 0], sizes = [8, 32], strides = [1, 1]} : vector<64x32xf32> to vector<8x32xf32>
    %44 = arith.addf %43, %3 : vector<8x32xf32>
    %cst_14 = arith.constant dense<0.000000e+00> : vector<8x32xf32>
    %45 = tpu.matmul %42, %2, %cst_14 {dimension_numbers = #tpu.dot_dimension_numbers<[1], [0], [0], [1], [0, 0, 1, 1], [], []>} : vector<8x32xf32>, vector<32x32xf32>, vector<8x32xf32> -> vector<8x32xf32>
    %46 = arith.addf %44, %45 : vector<8x32xf32>
    %47 = math.tanh %46 : vector<8x32xf32>
    %cst_15 = arith.constant dense<0.000000e+00> : vector<8x32xf32>
    %48 = tpu.matmul %47, %2, %cst_15 {dimension_numbers = #tpu.dot_dimension_numbers<[1], [0], [0], [1], [0, 0, 1, 1], [], []>} : vector<8x32xf32>, vector<32x32xf32>, vector<8x32xf32> -> vector<8x32xf32>
    %49 = arith.addf %3, %48 : vector<8x32xf32>
    %50 = math.tanh %49 : vector<8x32xf32>
    %cst_16 = arith.constant dense<0.000000e+00> : vector<8x32xf32>
    %51 = tpu.matmul %50, %2, %cst_16 {dimension_numbers = #tpu.dot_dimension_numbers<[1], [0], [0], [1], [0, 0, 1, 1], [], []>} : vector<8x32xf32>, vector<32x32xf32>, vector<8x32xf32> -> vector<8x32xf32>
    %52 = arith.addf %3, %51 : vector<8x32xf32>
    %53 = math.tanh %52 : vector<8x32xf32>
    %cst_17 = arith.constant dense<0.000000e+00> : vector<8x32xf32>
    %54 = tpu.matmul %53, %2, %cst_17 {dimension_numbers = #tpu.dot_dimension_numbers<[1], [0], [0], [1], [0, 0, 1, 1], [], []>} : vector<8x32xf32>, vector<32x32xf32>, vector<8x32xf32> -> vector<8x32xf32>
    %55 = arith.addf %3, %54 : vector<8x32xf32>
    %56 = math.tanh %55 : vector<8x32xf32>
    %cst_18 = arith.constant dense<0.000000e+00> : vector<8x32xf32>
    %57 = tpu.matmul %56, %2, %cst_18 {dimension_numbers = #tpu.dot_dimension_numbers<[1], [0], [0], [1], [0, 0, 1, 1], [], []>} : vector<8x32xf32>, vector<32x32xf32>, vector<8x32xf32> -> vector<8x32xf32>
    %58 = arith.addf %3, %57 : vector<8x32xf32>
    %59 = math.tanh %58 : vector<8x32xf32>
    %60 = tpu.concatenate %50, %53, %56, %59 in 0 : vector<8x32xf32>, vector<8x32xf32>, vector<8x32xf32>, vector<8x32xf32> -> vector<32x32xf32>
    %cst_19 = arith.constant dense<0.000000e+00> : vector<32x2xf32>
    %61 = tpu.matmul %60, %5, %cst_19 {dimension_numbers = #tpu.dot_dimension_numbers<[1], [0], [0], [1], [0, 0, 1, 1], [], []>} : vector<32x32xf32>, vector<32x2xf32>, vector<32x2xf32> -> vector<32x2xf32>
    %62 = vector.broadcast %6 : vector<1x2xf32> to vector<32x2xf32>
    %63 = arith.addf %61, %62 : vector<32x2xf32>
    %c0_20 = arith.constant 0 : index
    %c0_21 = arith.constant 0 : index
    %64 = vector.load %arg1[%c0_20, %c0_21] : memref<32x2xf32, #tpu.memory_space<vmem>>, vector<32x2xf32>
    tpu.vector_store %arg1[%c0_20, %c0_21], %63 {strides = array<i32>} : memref<32x2xf32, #tpu.memory_space<vmem>>, vector<32x2xf32>,
    return
  }
}

</mosaic_0001>

<llo_original>
// kernel: rnn_recursive_forward.1
$region0: #{rnn_recursive_forward.1}
  #allocation0 [shape = 'u32[]', space=smem, size = 0x4, offset = 0x4, fixed_abs, tag = 'smem constant byte address 0x4 - core index']
  #allocation1 [shape = 'u32[144,128]{1,0:T(1,128)}', space=vmem, size = 0x12000, scoped, tag = 'internal scratch']
  %s0 = inlined_call_operand.vmem [shape: f32[160,128], index: 0, kind: input, shape index: {}]
  %s1 = inlined_call_operand.vmem [shape: f32[32,2], index: 1, kind: output, shape index: {}]
  %s2 = sld [smem:[#allocation0]]
  $region14: #{rnn_recursive_forward.1} parent=0
    _
  %s4 = ssub.s32 1, %s2
  %s5 = scalar_select 0, %s4, %s2
  // Predicated region
  $region2: #{rnn_recursive_forward.1} parent=0 // pred_check
    _
  $region3: #{rnn_recursive_forward.1} parent=0 // pred_check_branch
    %7 = sbr.rel (0) target = $region5
  $region4: #{rnn_recursive_forward.1} parent=0 // pred_region
    _
  $region5: #{rnn_recursive_forward.1} parent=0 // pred_fallthru
    _
  %v8 = vld [vmem:[%s0] sm:$0xff]
  %v9 = vld [vmem:[%s0 + $0x8] sm:$0xff]
  %v10 = vld [vmem:[%s0 + $0x10] sm:$0xff]
  %v11 = vld [vmem:[%s0 + $0x18] sm:$0xff]
  %v12 = vld [vmem:[%s0 + $0x20] sm:$0xff]
  %v13 = vld [vmem:[%s0 + $0x28] sm:$0xff]
  %v14 = vld [vmem:[%s0 + $0x30] sm:$0xff]
  %v15 = vld [vmem:[%s0 + $0x38] sm:$0xff]
  %v16 = vld [vmem:[%s0 + $0x40] sm:$0xf]
  %v17 = vld [vmem:[%s0 + $0x48] sm:$0xff]
  %v18 = vld [vmem:[%s0 + $0x50] sm:$0xff]
  %v19 = vld [vmem:[%s0 + $0x58] sm:$0xff]
  %v20 = vld [vmem:[%s0 + $0x60] sm:$0xff]
  %v21 = vld [vmem:[%s0 + $0x68] sm:$0xff]
  %v22 = vld [vmem:[%s0 + $0x70] sm:$0xff]
  %v23 = vld [vmem:[%s0 + $0x78] sm:$0xff]
  %v24 = vld [vmem:[%s0 + $0x80] sm:$0xff]
  %v25 = vld [vmem:[%s0 + $0x88] sm:$0xff]
  %v26 = vld [vmem:[%s0 + $0x90] sm:$0xff]
  %v27 = vld [vmem:[%s0 + $0x98] sm:$0x1]
  %vm28 = vcmask 31744
  %v30 = vsel %vm28, %v8, 0
  %v33 = vsel %vm28, %v9, 0
  %v36 = vsel %vm28, %v10, 0
  %v39 = vsel %vm28, %v11, 0
  %v42 = vsel %vm28, %v12, 0
  %v45 = vsel %vm28, %v13, 0
  %v48 = vsel %vm28, %v14, 0
  %v51 = vsel %vm28, %v15, 0
  %vm53 = vcmask 1043456
  %v55 = vsel %vm53, %v16, 0
  %57 = vmatprep.subr.mxu0 0.0
  %58 = vmatpush1.msra.mxu0 %v55
  %59 = vmatprep.subr.mxu0 0.0
  %60 = vmatpush1.msra.mxu0 0.0
  %61 = vmatprep.subr.mxu0 0.0
  %62 = vmatpush1.msra.mxu0 0.0
  %63 = vmatprep.subr.mxu0 0.0
  %64 = vmatpush1.msra.mxu0 0.0
  %65 = vmatprep.subr.mxu0 0.0
  %66 = vmatpush1.msra.mxu0 0.0
  %67 = vmatprep.subr.mxu0 0.0
  %68 = vmatpush1.msra.mxu0 0.0
  %69 = vmatprep.subr.mxu0 0.0
  %70 = vmatpush1.msra.mxu0 0.0
  %71 = vmatprep.subr.mxu0 0.0
  %72 = vmatpush1.msra.mxu0 0.0
  %73 = vmatprep.subr.mxu0 0.0
  %74 = vmatpush1.msra.mxu0 0.0
  %75 = vmatprep.subr.mxu0 0.0
  %76 = vmatpush1.msra.mxu0 0.0
  %77 = vmatprep.subr.mxu0 0.0
  %78 = vmatpush1.msra.mxu0 0.0
  %79 = vmatprep.subr.mxu0 0.0
  %80 = vmatpush1.msra.mxu0 0.0
  %81 = vmatprep.subr.mxu0 0.0
  %82 = vmatpush1.msra.mxu0 0.0
  %83 = vmatprep.subr.mxu0 0.0
  %84 = vmatpush1.msra.mxu0 0.0
  %85 = vmatprep.subr.mxu0 0.0
  %86 = vmatpush1.msra.mxu0 0.0
  %87 = vmatprep.subr.mxu0 0.0
  %88 = vmatpush1.msra.mxu0 0.0
  %89 = vmatprep.subr.mxu0 0.0
  %90 = vmatpush1.msra.mxu0 0.0
  %91 = vmatprep.subr.mxu0 0.0
  %92 = vmatpush1.msra.mxu0 0.0
  %93 = vmatprep.subr.mxu0 0.0
  %94 = vmatpush1.msra.mxu0 0.0
  %95 = vmatprep.subr.mxu0 0.0
  %96 = vmatpush1.msra.mxu0 0.0
  %97 = vmatprep.subr.mxu0 0.0
  %98 = vmatpush1.msra.mxu0 0.0
  %99 = vmatprep.subr.mxu0 0.0
  %100 = vmatpush1.msra.mxu0 0.0
  %101 = vmatprep.subr.mxu0 0.0
  %102 = vmatpush1.msra.mxu0 0.0
  %103 = vmatprep.subr.mxu0 0.0
  %104 = vmatpush1.msra.mxu0 0.0
  %105 = vmatprep.subr.mxu0 0.0
  %106 = vmatpush1.msra.mxu0 0.0
  %107 = vmatprep.subr.mxu0 0.0
  %108 = vmatpush1.msra.mxu0 0.0
  %109 = vmatprep.subr.mxu0 0.0
  %110 = vmatpush1.msra.mxu0 0.0
  %111 = vmatprep.subr.mxu0 0.0
  %112 = vmatpush1.msra.mxu0 0.0
  %113 = vmatprep.subr.mxu0 0.0
  %114 = vmatpush1.msra.mxu0 0.0
  %115 = vmatprep.subr.mxu0 0.0
  %116 = vmatpush1.msra.mxu0 0.0
  %117 = vmatprep.subr.mxu0 0.0
  %118 = vmatpush1.msra.mxu0 0.0
  %119 = vmatprep.subr.mxu0 0.0
  %120 = vmatpush1.msra.mxu0 0.0
  %121 = vmatprep.mubr.f32.mxu0 0.0
  %122 = vmatmul.mubr.f32.gmra.mrb[0].mxu0 %v30
  %v123 = vpop.f32.mrb[0].mxu0
  %v124 = vadd.f32 0.0, %v123
  %v125 = vpop.f32.mrb[0].mxu0
  %126 = vmatprep.mubr.f32.mxu0 0.0
  %127 = vmatmul.mubr.f32.gmra.mrb[0].mxu0 %v33
  %v128 = vpop.f32.mrb[0].mxu0
  %v129 = vadd.f32 0.0, %v128
  %v130 = vpop.f32.mrb[0].mxu0
  %131 = vmatprep.mubr.f32.mxu0 0.0
  %132 = vmatmul.mubr.f32.gmra.mrb[0].mxu0 %v36
  %v133 = vpop.f32.mrb[0].mxu0
  %v134 = vadd.f32 0.0, %v133
  %v135 = vpop.f32.mrb[0].mxu0
  %136 = vmatprep.mubr.f32.mxu0 0.0
  %137 = vmatmul.mubr.f32.gmra.mrb[0].mxu0 %v39
  %v138 = vpop.f32.mrb[0].mxu0
  %v139 = vadd.f32 0.0, %v138
  %v140 = vpop.f32.mrb[0].mxu0
  %141 = vmatprep.mubr.f32.mxu0 0.0
  %142 = vmatmul.mubr.f32.gmra.mrb[0].mxu0 %v42
  %v143 = vpop.f32.mrb[0].mxu0
  %v144 = vadd.f32 0.0, %v143
  %v145 = vpop.f32.mrb[0].mxu0
  %146 = vmatprep.mubr.f32.mxu0 0.0
  %147 = vmatmul.mubr.f32.gmra.mrb[0].mxu0 %v45
  %v148 = vpop.f32.mrb[0].mxu0
  %v149 = vadd.f32 0.0, %v148
  %v150 = vpop.f32.mrb[0].mxu0
  %151 = vmatprep.mubr.f32.mxu0 0.0
  %152 = vmatmul.mubr.f32.gmra.mrb[0].mxu0 %v48
  %v153 = vpop.f32.mrb[0].mxu0
  %v154 = vadd.f32 0.0, %v153
  %v155 = vpop.f32.mrb[0].mxu0
  %156 = vmatprep.mubr.f32.mxu0 0.0
  %157 = vmatmul.mubr.f32.gmra.mrb[0].mxu0 %v51
  %v158 = vpop.f32.mrb[0].mxu0
  %v159 = vadd.f32 0.0, %v158
  %v160 = vpop.f32.mrb[0].mxu0
  %161 = vdwg.mxu0
  %v162 = vadd.f32 %v124, %v21
  %vm163 = vcmask 261120
  %v165 = vsel %vm163, %v22, 0
  %167 = vmatprep.subr.mxu0 0.0
  %168 = vmatpush1.msra.mxu0 %v17
  %169 = vmatprep.subr.mxu0 0.0
  %170 = vmatpush1.msra.mxu0 %v18
  %171 = vmatprep.subr.mxu0 0.0
  %172 = vmatpush1.msra.mxu0 %v19
  %173 = vmatprep.subr.mxu0 0.0
  %174 = vmatpush1.msra.mxu0 %v20
  %175 = vmatprep.subr.mxu0 0.0
  %176 = vmatpush1.msra.mxu0 0.0
  %177 = vmatprep.subr.mxu0 0.0
  %178 = vmatpush1.msra.mxu0 0.0
  %179 = vmatprep.subr.mxu0 0.0
  %180 = vmatpush1.msra.mxu0 0.0
  %181 = vmatprep.subr.mxu0 0.0
  %182 = vmatpush1.msra.mxu0 0.0
  %183 = vmatprep.subr.mxu0 0.0
  %184 = vmatpush1.msra.mxu0 0.0
  %185 = vmatprep.subr.mxu0 0.0
  %186 = vmatpush1.msra.mxu0 0.0
  %187 = vmatprep.subr.mxu0 0.0
  %188 = vmatpush1.msra.mxu0 0.0
  %189 = vmatprep.subr.mxu0 0.0
  %190 = vmatpush1.msra.mxu0 0.0
  %191 = vmatprep.subr.mxu0 0.0
  %192 = vmatpush1.msra.mxu0 0.0
  %193 = vmatprep.subr.mxu0 0.0
  %194 = vmatpush1.msra.mxu0 0.0
  %195 = vmatprep.subr.mxu0 0.0
  %196 = vmatpush1.msra.mxu0 0.0
  %197 = vmatprep.subr.mxu0 0.0
  %198 = vmatpush1.msra.mxu0 0.0
  %199 = vmatprep.subr.mxu0 0.0
  %200 = vmatpush1.msra.mxu0 0.0
  %201 = vmatprep.subr.mxu0 0.0
  %202 = vmatpush1.msra.mxu0 0.0
  %203 = vmatprep.subr.mxu0 0.0
  %204 = vmatpush1.msra.mxu0 0.0
  %205 = vmatprep.subr.mxu0 0.0
  %206 = vmatpush1.msra.mxu0 0.0
  %207 = vmatprep.subr.mxu0 0.0
  %208 = vmatpush1.msra.mxu0 0.0
  %209 = vmatprep.subr.mxu0 0.0
  %210 = vmatpush1.msra.mxu0 0.0
  %211 = vmatprep.subr.mxu0 0.0
  %212 = vmatpush1.msra.mxu0 0.0
  %213 = vmatprep.subr.mxu0 0.0
  %214 = vmatpush1.msra.mxu0 0.0
  %215 = vmatprep.subr.mxu0 0.0
  %216 = vmatpush1.msra.mxu0 0.0
  %217 = vmatprep.subr.mxu0 0.0
  %218 = vmatpush1.msra.mxu0 0.0
  %219 = vmatprep.subr.mxu0 0.0
  %220 = vmatpush1.msra.mxu0 0.0
  %221 = vmatprep.subr.mxu0 0.0
  %222 = vmatpush1.msra.mxu0 0.0
  %223 = vmatprep.subr.mxu0 0.0
  %224 = vmatpush1.msra.mxu0 0.0
  %225 = vmatprep.subr.mxu0 0.0
  %226 = vmatpush1.msra.mxu0 0.0
  %227 = vmatprep.subr.mxu0 0.0
  %228 = vmatpush1.msra.mxu0 0.0
  %229 = vmatprep.subr.mxu0 0.0
  %230 = vmatpush1.msra.mxu0 0.0
  %231 = vmatprep.mubr.f32.mxu0 0.0
  %232 = vmatmul.mubr.f32.gmra.mrb[0].mxu0 %v165
  %v233 = vpop.f32.mrb[0].mxu0
  %v234 = vadd.f32 0.0, %v233
  %v235 = vpop.f32.mrb[0].mxu0
  %236 = vdwg.mxu0
  %v237 = vadd.f32 %v162, %v234
  %v238 = vtanh.pop %v237
  %v239 = vadd.f32 %v129, %v21
  %v241 = vsel %vm163, %v238, 0
  %243 = vmatprep.subr.mxu0 0.0
  %244 = vmatpush1.msra.mxu0 %v17
  %245 = vmatprep.subr.mxu0 0.0
  %246 = vmatpush1.msra.mxu0 %v18
  %247 = vmatprep.subr.mxu0 0.0
  %248 = vmatpush1.msra.mxu0 %v19
  %249 = vmatprep.subr.mxu0 0.0
  %250 = vmatpush1.msra.mxu0 %v20
  %251 = vmatprep.subr.mxu0 0.0
  %252 = vmatpush1.msra.mxu0 0.0
  %253 = vmatprep.subr.mxu0 0.0
  %254 = vmatpush1.msra.mxu0 0.0
  %255 = vmatprep.subr.mxu0 0.0
  %256 = vmatpush1.msra.mxu0 0.0
  %257 = vmatprep.subr.mxu0 0.0
  %258 = vmatpush1.msra.mxu0 0.0
  %259 = vmatprep.subr.mxu0 0.0
  %260 = vmatpush1.msra.mxu0 0.0
  %261 = vmatprep.subr.mxu0 0.0
  %262 = vmatpush1.msra.mxu0 0.0
  %263 = vmatprep.subr.mxu0 0.0
  %264 = vmatpush1.msra.mxu0 0.0
  %265 = vmatprep.subr.mxu0 0.0
  %266 = vmatpush1.msra.mxu0 0.0
  %267 = vmatprep.subr.mxu0 0.0
  %268 = vmatpush1.msra.mxu0 0.0
  %269 = vmatprep.subr.mxu0 0.0
  %270 = vmatpush1.msra.mxu0 0.0
  %271 = vmatprep.subr.mxu0 0.0
  %272 = vmatpush1.msra.mxu0 0.0
  %273 = vmatprep.subr.mxu0 0.0
  %274 = vmatpush1.msra.mxu0 0.0
  %275 = vmatprep.subr.mxu0 0.0
  %276 = vmatpush1.msra.mxu0 0.0
  %277 = vmatprep.subr.mxu0 0.0
  %278 = vmatpush1.msra.mxu0 0.0
  %279 = vmatprep.subr.mxu0 0.0
  %280 = vmatpush1.msra.mxu0 0.0
  %281 = vmatprep.subr.mxu0 0.0
  %282 = vmatpush1.msra.mxu0 0.0
  %283 = vmatprep.subr.mxu0 0.0
  %284 = vmatpush1.msra.mxu0 0.0
  %285 = vmatprep.subr.mxu0 0.0
  %286 = vmatpush1.msra.mxu0 0.0
  %287 = vmatprep.subr.mxu0 0.0
  %288 = vmatpush1.msra.mxu0 0.0
  %289 = vmatprep.subr.mxu0 0.0
  %290 = vmatpush1.msra.mxu0 0.0
  %291 = vmatprep.subr.mxu0 0.0
  %292 = vmatpush1.msra.mxu0 0.0
  %293 = vmatprep.subr.mxu0 0.0
  %294 = vmatpush1.msra.mxu0 0.0
  %295 = vmatprep.subr.mxu0 0.0
  %296 = vmatpush1.msra.mxu0 0.0
  %297 = vmatprep.subr.mxu0 0.0
  %298 = vmatpush1.msra.mxu0 0.0
  %299 = vmatprep.subr.mxu0 0.0
  %300 = vmatpush1.msra.mxu0 0.0
  %301 = vmatprep.subr.mxu0 0.0
  %302 = vmatpush1.msra.mxu0 0.0
  %303 = vmatprep.subr.mxu0 0.0
  %304 = vmatpush1.msra.mxu0 0.0
  %305 = vmatprep.subr.mxu0 0.0
  %306 = vmatpush1.msra.mxu0 0.0
  %307 = vmatprep.mubr.f32.mxu0 0.0
  %308 = vmatmul.mubr.f32.gmra.mrb[0].mxu0 %v241
  %v309 = vpop.f32.mrb[0].mxu0
  %v310 = vadd.f32 0.0, %v309
  %v311 = vpop.f32.mrb[0].mxu0
  %312 = vdwg.mxu0
  %v313 = vadd.f32 %v239, %v310
  %v314 = vtanh.pop %v313
  %v315 = vadd.f32 %v134, %v21
  %v317 = vsel %vm163, %v314, 0
  %319 = vmatprep.subr.mxu0 0.0
  %320 = vmatpush1.msra.mxu0 %v17
  %321 = vmatprep.subr.mxu0 0.0
  %322 = vmatpush1.msra.mxu0 %v18
  %323 = vmatprep.subr.mxu0 0.0
  %324 = vmatpush1.msra.mxu0 %v19
  %325 = vmatprep.subr.mxu0 0.0
  %326 = vmatpush1.msra.mxu0 %v20
  %327 = vmatprep.subr.mxu0 0.0
  %328 = vmatpush1.msra.mxu0 0.0
  %329 = vmatprep.subr.mxu0 0.0
  %330 = vmatpush1.msra.mxu0 0.0
  %331 = vmatprep.subr.mxu0 0.0
  %332 = vmatpush1.msra.mxu0 0.0
  %333 = vmatprep.subr.mxu0 0.0
  %334 = vmatpush1.msra.mxu0 0.0
  %335 = vmatprep.subr.mxu0 0.0
  %336 = vmatpush1.msra.mxu0 0.0
  %337 = vmatprep.subr.mxu0 0.0
  %338 = vmatpush1.msra.mxu0 0.0
  %339 = vmatprep.subr.mxu0 0.0
  %340 = vmatpush1.msra.mxu0 0.0
  %341 = vmatprep.subr.mxu0 0.0
  %342 = vmatpush1.msra.mxu0 0.0
  %343 = vmatprep.subr.mxu0 0.0
  %344 = vmatpush1.msra.mxu0 0.0
  %345 = vmatprep.subr.mxu0 0.0
  %346 = vmatpush1.msra.mxu0 0.0
  %347 = vmatprep.subr.mxu0 0.0
  %348 = vmatpush1.msra.mxu0 0.0
  %349 = vmatprep.subr.mxu0 0.0
  %350 = vmatpush1.msra.mxu0 0.0
  %351 = vmatprep.subr.mxu0 0.0
  %352 = vmatpush1.msra.mxu0 0.0
  %353 = vmatprep.subr.mxu0 0.0
  %354 = vmatpush1.msra.mxu0 0.0
  %355 = vmatprep.subr.mxu0 0.0
  %356 = vmatpush1.msra.mxu0 0.0
  %357 = vmatprep.subr.mxu0 0.0
  %358 = vmatpush1.msra.mxu0 0.0
  %359 = vmatprep.subr.mxu0 0.0
  %360 = vmatpush1.msra.mxu0 0.0
  %361 = vmatprep.subr.mxu0 0.0
  %362 = vmatpush1.msra.mxu0 0.0
  %363 = vmatprep.subr.mxu0 0.0
  %364 = vmatpush1.msra.mxu0 0.0
  %365 = vmatprep.subr.mxu0 0.0
  %366 = vmatpush1.msra.mxu0 0.0
  %367 = vmatprep.subr.mxu0 0.0
  %368 = vmatpush1.msra.mxu0 0.0
  %369 = vmatprep.subr.mxu0 0.0
  %370 = vmatpush1.msra.mxu0 0.0
  %371 = vmatprep.subr.mxu0 0.0
  %372 = vmatpush1.msra.mxu0 0.0
  %373 = vmatprep.subr.mxu0 0.0
  %374 = vmatpush1.msra.mxu0 0.0
  %375 = vmatprep.subr.mxu0 0.0
  %376 = vmatpush1.msra.mxu0 0.0
  %377 = vmatprep.subr.mxu0 0.0
  %378 = vmatpush1.msra.mxu0 0.0
  %379 = vmatprep.subr.mxu0 0.0
  %380 = vmatpush1.msra.mxu0 0.0
  %381 = vmatprep.subr.mxu0 0.0
  %382 = vmatpush1.msra.mxu0 0.0
  %383 = vmatprep.mubr.f32.mxu0 0.0
  %384 = vmatmul.mubr.f32.gmra.mrb[0].mxu0 %v317
  %v385 = vpop.f32.mrb[0].mxu0
  %v386 = vadd.f32 0.0, %v385
  %v387 = vpop.f32.mrb[0].mxu0
  %388 = vdwg.mxu0
  %v389 = vadd.f32 %v315, %v386
  %v390 = vtanh.pop %v389
  %v391 = vadd.f32 %v139, %v21
  %v393 = vsel %vm163, %v390, 0
  %395 = vmatprep.subr.mxu0 0.0
  %396 = vmatpush1.msra.mxu0 %v17
  %397 = vmatprep.subr.mxu0 0.0
  %398 = vmatpush1.msra.mxu0 %v18
  %399 = vmatprep.subr.mxu0 0.0
  %400 = vmatpush1.msra.mxu0 %v19
  %401 = vmatprep.subr.mxu0 0.0
  %402 = vmatpush1.msra.mxu0 %v20
  %403 = vmatprep.subr.mxu0 0.0
  %404 = vmatpush1.msra.mxu0 0.0
  %405 = vmatprep.subr.mxu0 0.0
  %406 = vmatpush1.msra.mxu0 0.0
  %407 = vmatprep.subr.mxu0 0.0
  %408 = vmatpush1.msra.mxu0 0.0
  %409 = vmatprep.subr.mxu0 0.0
  %410 = vmatpush1.msra.mxu0 0.0
  %411 = vmatprep.subr.mxu0 0.0
  %412 = vmatpush1.msra.mxu0 0.0
  %413 = vmatprep.subr.mxu0 0.0
  %414 = vmatpush1.msra.mxu0 0.0
  %415 = vmatprep.subr.mxu0 0.0
  %416 = vmatpush1.msra.mxu0 0.0
  %417 = vmatprep.subr.mxu0 0.0
  %418 = vmatpush1.msra.mxu0 0.0
  %419 = vmatprep.subr.mxu0 0.0
  %420 = vmatpush1.msra.mxu0 0.0
  %421 = vmatprep.subr.mxu0 0.0
  %422 = vmatpush1.msra.mxu0 0.0
  %423 = vmatprep.subr.mxu0 0.0
  %424 = vmatpush1.msra.mxu0 0.0
  %425 = vmatprep.subr.mxu0 0.0
  %426 = vmatpush1.msra.mxu0 0.0
  %427 = vmatprep.subr.mxu0 0.0
  %428 = vmatpush1.msra.mxu0 0.0
  %429 = vmatprep.subr.mxu0 0.0
  %430 = vmatpush1.msra.mxu0 0.0
  %431 = vmatprep.subr.mxu0 0.0
  %432 = vmatpush1.msra.mxu0 0.0
  %433 = vmatprep.subr.mxu0 0.0
  %434 = vmatpush1.msra.mxu0 0.0
  %435 = vmatprep.subr.mxu0 0.0
  %436 = vmatpush1.msra.mxu0 0.0
  %437 = vmatprep.subr.mxu0 0.0
  %438 = vmatpush1.msra.mxu0 0.0
  %439 = vmatprep.subr.mxu0 0.0
  %440 = vmatpush1.msra.mxu0 0.0
  %441 = vmatprep.subr.mxu0 0.0
  %442 = vmatpush1.msra.mxu0 0.0
  %443 = vmatprep.subr.mxu0 0.0
  %444 = vmatpush1.msra.mxu0 0.0
  %445 = vmatprep.subr.mxu0 0.0
  %446 = vmatpush1.msra.mxu0 0.0
  %447 = vmatprep.subr.mxu0 0.0
  %448 = vmatpush1.msra.mxu0 0.0
  %449 = vmatprep.subr.mxu0 0.0
  %450 = vmatpush1.msra.mxu0 0.0
  %451 = vmatprep.subr.mxu0 0.0
  %452 = vmatpush1.msra.mxu0 0.0
  %453 = vmatprep.subr.mxu0 0.0
  %454 = vmatpush1.msra.mxu0 0.0
  %455 = vmatprep.subr.mxu0 0.0
  %456 = vmatpush1.msra.mxu0 0.0
  %457 = vmatprep.subr.mxu0 0.0
  %458 = vmatpush1.msra.mxu0 0.0
  %459 = vmatprep.mubr.f32.mxu0 0.0
  %460 = vmatmul.mubr.f32.gmra.mrb[0].mxu0 %v393
  %v461 = vpop.f32.mrb[0].mxu0
  %v462 = vadd.f32 0.0, %v461
  %v463 = vpop.f32.mrb[0].mxu0
  %464 = vdwg.mxu0
  %v465 = vadd.f32 %v391, %v462
  %v466 = vtanh.pop %v465
  %v467 = vadd.f32 %v144, %v21
  %v469 = vsel %vm163, %v466, 0
  %471 = vmatprep.subr.mxu0 0.0
  %472 = vmatpush1.msra.mxu0 %v17
  %473 = vmatprep.subr.mxu0 0.0
  %474 = vmatpush1.msra.mxu0 %v18
  %475 = vmatprep.subr.mxu0 0.0
  %476 = vmatpush1.msra.mxu0 %v19
  %477 = vmatprep.subr.mxu0 0.0
  %478 = vmatpush1.msra.mxu0 %v20
  %479 = vmatprep.subr.mxu0 0.0
  %480 = vmatpush1.msra.mxu0 0.0
  %481 = vmatprep.subr.mxu0 0.0
  %482 = vmatpush1.msra.mxu0 0.0
  %483 = vmatprep.subr.mxu0 0.0
  %484 = vmatpush1.msra.mxu0 0.0
  %485 = vmatprep.subr.mxu0 0.0
  %486 = vmatpush1.msra.mxu0 0.0
  %487 = vmatprep.subr.mxu0 0.0
  %488 = vmatpush1.msra.mxu0 0.0
  %489 = vmatprep.subr.mxu0 0.0
  %490 = vmatpush1.msra.mxu0 0.0
  %491 = vmatprep.subr.mxu0 0.0
  %492 = vmatpush1.msra.mxu0 0.0
  %493 = vmatprep.subr.mxu0 0.0
  %494 = vmatpush1.msra.mxu0 0.0
  %495 = vmatprep.subr.mxu0 0.0
  %496 = vmatpush1.msra.mxu0 0.0
  %497 = vmatprep.subr.mxu0 0.0
  %498 = vmatpush1.msra.mxu0 0.0
  %499 = vmatprep.subr.mxu0 0.0
  %500 = vmatpush1.msra.mxu0 0.0
  %501 = vmatprep.subr.mxu0 0.0
  %502 = vmatpush1.msra.mxu0 0.0
  %503 = vmatprep.subr.mxu0 0.0
  %504 = vmatpush1.msra.mxu0 0.0
  %505 = vmatprep.subr.mxu0 0.0
  %506 = vmatpush1.msra.mxu0 0.0
  %507 = vmatprep.subr.mxu0 0.0
  %508 = vmatpush1.msra.mxu0 0.0
  %509 = vmatprep.subr.mxu0 0.0
  %510 = vmatpush1.msra.mxu0 0.0
  %511 = vmatprep.subr.mxu0 0.0
  %512 = vmatpush1.msra.mxu0 0.0
  %513 = vmatprep.subr.mxu0 0.0
  %514 = vmatpush1.msra.mxu0 0.0
  %515 = vmatprep.subr.mxu0 0.0
  %516 = vmatpush1.msra.mxu0 0.0
  %517 = vmatprep.subr.mxu0 0.0
  %518 = vmatpush1.msra.mxu0 0.0
  %519 = vmatprep.subr.mxu0 0.0
  %520 = vmatpush1.msra.mxu0 0.0
  %521 = vmatprep.subr.mxu0 0.0
  %522 = vmatpush1.msra.mxu0 0.0
  %523 = vmatprep.subr.mxu0 0.0
  %524 = vmatpush1.msra.mxu0 0.0
  %525 = vmatprep.subr.mxu0 0.0
  %526 = vmatpush1.msra.mxu0 0.0
  %527 = vmatprep.subr.mxu0 0.0
  %528 = vmatpush1.msra.mxu0 0.0
  %529 = vmatprep.subr.mxu0 0.0
  %530 = vmatpush1.msra.mxu0 0.0
  %531 = vmatprep.subr.mxu0 0.0
  %532 = vmatpush1.msra.mxu0 0.0
  %533 = vmatprep.subr.mxu0 0.0
  %534 = vmatpush1.msra.mxu0 0.0
  %535 = vmatprep.mubr.f32.mxu0 0.0
  %536 = vmatmul.mubr.f32.gmra.mrb[0].mxu0 %v469
  %v537 = vpop.f32.mrb[0].mxu0
  %v538 = vadd.f32 0.0, %v537
  %v539 = vpop.f32.mrb[0].mxu0
  %540 = vdwg.mxu0
  %v541 = vadd.f32 %v467, %v538
  %v542 = vtanh.pop %v541
  %v543 = vadd.f32 %v149, %v21
  %v545 = vsel %vm163, %v542, 0
  %547 = vmatprep.subr.mxu0 0.0
  %548 = vmatpush1.msra.mxu0 %v17
  %549 = vmatprep.subr.mxu0 0.0
  %550 = vmatpush1.msra.mxu0 %v18
  %551 = vmatprep.subr.mxu0 0.0
  %552 = vmatpush1.msra.mxu0 %v19
  %553 = vmatprep.subr.mxu0 0.0
  %554 = vmatpush1.msra.mxu0 %v20
  %555 = vmatprep.subr.mxu0 0.0
  %556 = vmatpush1.msra.mxu0 0.0
  %557 = vmatprep.subr.mxu0 0.0
  %558 = vmatpush1.msra.mxu0 0.0
  %559 = vmatprep.subr.mxu0 0.0
  %560 = vmatpush1.msra.mxu0 0.0
  %561 = vmatprep.subr.mxu0 0.0
  %562 = vmatpush1.msra.mxu0 0.0
  %563 = vmatprep.subr.mxu0 0.0
  %564 = vmatpush1.msra.mxu0 0.0
  %565 = vmatprep.subr.mxu0 0.0
  %566 = vmatpush1.msra.mxu0 0.0
  %567 = vmatprep.subr.mxu0 0.0
  %568 = vmatpush1.msra.mxu0 0.0
  %569 = vmatprep.subr.mxu0 0.0
  %570 = vmatpush1.msra.mxu0 0.0
  %571 = vmatprep.subr.mxu0 0.0
  %572 = vmatpush1.msra.mxu0 0.0
  %573 = vmatprep.subr.mxu0 0.0
  %574 = vmatpush1.msra.mxu0 0.0
  %575 = vmatprep.subr.mxu0 0.0
  %576 = vmatpush1.msra.mxu0 0.0
  %577 = vmatprep.subr.mxu0 0.0
  %578 = vmatpush1.msra.mxu0 0.0
  %579 = vmatprep.subr.mxu0 0.0
  %580 = vmatpush1.msra.mxu0 0.0
  %581 = vmatprep.subr.mxu0 0.0
  %582 = vmatpush1.msra.mxu0 0.0
  %583 = vmatprep.subr.mxu0 0.0
  %584 = vmatpush1.msra.mxu0 0.0
  %585 = vmatprep.subr.mxu0 0.0
  %586 = vmatpush1.msra.mxu0 0.0
  %587 = vmatprep.subr.mxu0 0.0
  %588 = vmatpush1.msra.mxu0 0.0
  %589 = vmatprep.subr.mxu0 0.0
  %590 = vmatpush1.msra.mxu0 0.0
  %591 = vmatprep.subr.mxu0 0.0
  %592 = vmatpush1.msra.mxu0 0.0
  %593 = vmatprep.subr.mxu0 0.0
  %594 = vmatpush1.msra.mxu0 0.0
  %595 = vmatprep.subr.mxu0 0.0
  %596 = vmatpush1.msra.mxu0 0.0
  %597 = vmatprep.subr.mxu0 0.0
  %598 = vmatpush1.msra.mxu0 0.0
  %599 = vmatprep.subr.mxu0 0.0
  %600 = vmatpush1.msra.mxu0 0.0
  %601 = vmatprep.subr.mxu0 0.0
  %602 = vmatpush1.msra.mxu0 0.0
  %603 = vmatprep.subr.mxu0 0.0
  %604 = vmatpush1.msra.mxu0 0.0
  %605 = vmatprep.subr.mxu0 0.0
  %606 = vmatpush1.msra.mxu0 0.0
  %607 = vmatprep.subr.mxu0 0.0
  %608 = vmatpush1.msra.mxu0 0.0
  %609 = vmatprep.subr.mxu0 0.0
  %610 = vmatpush1.msra.mxu0 0.0
  %611 = vmatprep.mubr.f32.mxu0 0.0
  %612 = vmatmul.mubr.f32.gmra.mrb[0].mxu0 %v545
  %v613 = vpop.f32.mrb[0].mxu0
  %v614 = vadd.f32 0.0, %v613
  %v615 = vpop.f32.mrb[0].mxu0
  %616 = vdwg.mxu0
  %v617 = vadd.f32 %v543, %v614
  %v618 = vtanh.pop %v617
  %v619 = vadd.f32 %v154, %v21
  %v621 = vsel %vm163, %v618, 0
  %623 = vmatprep.subr.mxu0 0.0
  %624 = vmatpush1.msra.mxu0 %v17
  %625 = vmatprep.subr.mxu0 0.0
  %626 = vmatpush1.msra.mxu0 %v18
  %627 = vmatprep.subr.mxu0 0.0
  %628 = vmatpush1.msra.mxu0 %v19
  %629 = vmatprep.subr.mxu0 0.0
  %630 = vmatpush1.msra.mxu0 %v20
  %631 = vmatprep.subr.mxu0 0.0
  %632 = vmatpush1.msra.mxu0 0.0
  %633 = vmatprep.subr.mxu0 0.0
  %634 = vmatpush1.msra.mxu0 0.0
  %635 = vmatprep.subr.mxu0 0.0
  %636 = vmatpush1.msra.mxu0 0.0
  %637 = vmatprep.subr.mxu0 0.0
  %638 = vmatpush1.msra.mxu0 0.0
  %639 = vmatprep.subr.mxu0 0.0
  %640 = vmatpush1.msra.mxu0 0.0
  %641 = vmatprep.subr.mxu0 0.0
  %642 = vmatpush1.msra.mxu0 0.0
  %643 = vmatprep.subr.mxu0 0.0
  %644 = vmatpush1.msra.mxu0 0.0
  %645 = vmatprep.subr.mxu0 0.0
  %646 = vmatpush1.msra.mxu0 0.0
  %647 = vmatprep.subr.mxu0 0.0
  %648 = vmatpush1.msra.mxu0 0.0
  %649 = vmatprep.subr.mxu0 0.0
  %650 = vmatpush1.msra.mxu0 0.0
  %651 = vmatprep.subr.mxu0 0.0
  %652 = vmatpush1.msra.mxu0 0.0
  %653 = vmatprep.subr.mxu0 0.0
  %654 = vmatpush1.msra.mxu0 0.0
  %655 = vmatprep.subr.mxu0 0.0
  %656 = vmatpush1.msra.mxu0 0.0
  %657 = vmatprep.subr.mxu0 0.0
  %658 = vmatpush1.msra.mxu0 0.0
  %659 = vmatprep.subr.mxu0 0.0
  %660 = vmatpush1.msra.mxu0 0.0
  %661 = vmatprep.subr.mxu0 0.0
  %662 = vmatpush1.msra.mxu0 0.0
  %663 = vmatprep.subr.mxu0 0.0
  %664 = vmatpush1.msra.mxu0 0.0
  %665 = vmatprep.subr.mxu0 0.0
  %666 = vmatpush1.msra.mxu0 0.0
  %667 = vmatprep.subr.mxu0 0.0
  %668 = vmatpush1.msra.mxu0 0.0
  %669 = vmatprep.subr.mxu0 0.0
  %670 = vmatpush1.msra.mxu0 0.0
  %671 = vmatprep.subr.mxu0 0.0
  %672 = vmatpush1.msra.mxu0 0.0
  %673 = vmatprep.subr.mxu0 0.0
  %674 = vmatpush1.msra.mxu0 0.0
  %675 = vmatprep.subr.mxu0 0.0
  %676 = vmatpush1.msra.mxu0 0.0
  %677 = vmatprep.subr.mxu0 0.0
  %678 = vmatpush1.msra.mxu0 0.0
  %679 = vmatprep.subr.mxu0 0.0
  %680 = vmatpush1.msra.mxu0 0.0
  %681 = vmatprep.subr.mxu0 0.0
  %682 = vmatpush1.msra.mxu0 0.0
  %683 = vmatprep.subr.mxu0 0.0
  %684 = vmatpush1.msra.mxu0 0.0
  %685 = vmatprep.subr.mxu0 0.0
  %686 = vmatpush1.msra.mxu0 0.0
  %687 = vmatprep.mubr.f32.mxu0 0.0
  %688 = vmatmul.mubr.f32.gmra.mrb[0].mxu0 %v621
  %v689 = vpop.f32.mrb[0].mxu0
  %v690 = vadd.f32 0.0, %v689
  %v691 = vpop.f32.mrb[0].mxu0
  %692 = vdwg.mxu0
  %v693 = vadd.f32 %v619, %v690
  %v694 = vtanh.pop %v693
  %v695 = vadd.f32 %v159, %v21
  %v697 = vsel %vm163, %v694, 0
  %699 = vmatprep.subr.mxu0 0.0
  %700 = vmatpush1.msra.mxu0 %v17
  %701 = vmatprep.subr.mxu0 0.0
  %702 = vmatpush1.msra.mxu0 %v18
  %703 = vmatprep.subr.mxu0 0.0
  %704 = vmatpush1.msra.mxu0 %v19
  %705 = vmatprep.subr.mxu0 0.0
  %706 = vmatpush1.msra.mxu0 %v20
  %707 = vmatprep.subr.mxu0 0.0
  %708 = vmatpush1.msra.mxu0 0.0
  %709 = vmatprep.subr.mxu0 0.0
  %710 = vmatpush1.msra.mxu0 0.0
  %711 = vmatprep.subr.mxu0 0.0
  %712 = vmatpush1.msra.mxu0 0.0
  %713 = vmatprep.subr.mxu0 0.0
  %714 = vmatpush1.msra.mxu0 0.0
  %715 = vmatprep.subr.mxu0 0.0
  %716 = vmatpush1.msra.mxu0 0.0
  %717 = vmatprep.subr.mxu0 0.0
  %718 = vmatpush1.msra.mxu0 0.0
  %719 = vmatprep.subr.mxu0 0.0
  %720 = vmatpush1.msra.mxu0 0.0
  %721 = vmatprep.subr.mxu0 0.0
  %722 = vmatpush1.msra.mxu0 0.0
  %723 = vmatprep.subr.mxu0 0.0
  %724 = vmatpush1.msra.mxu0 0.0
  %725 = vmatprep.subr.mxu0 0.0
  %726 = vmatpush1.msra.mxu0 0.0
  %727 = vmatprep.subr.mxu0 0.0
  %728 = vmatpush1.msra.mxu0 0.0
  %729 = vmatprep.subr.mxu0 0.0
  %730 = vmatpush1.msra.mxu0 0.0
  %731 = vmatprep.subr.mxu0 0.0
  %732 = vmatpush1.msra.mxu0 0.0
  %733 = vmatprep.subr.mxu0 0.0
  %734 = vmatpush1.msra.mxu0 0.0
  %735 = vmatprep.subr.mxu0 0.0
  %736 = vmatpush1.msra.mxu0 0.0
  %737 = vmatprep.subr.mxu0 0.0
  %738 = vmatpush1.msra.mxu0 0.0
  %739 = vmatprep.subr.mxu0 0.0
  %740 = vmatpush1.msra.mxu0 0.0
  %741 = vmatprep.subr.mxu0 0.0
  %742 = vmatpush1.msra.mxu0 0.0
  %743 = vmatprep.subr.mxu0 0.0
  %744 = vmatpush1.msra.mxu0 0.0
  %745 = vmatprep.subr.mxu0 0.0
  %746 = vmatpush1.msra.mxu0 0.0
  %747 = vmatprep.subr.mxu0 0.0
  %748 = vmatpush1.msra.mxu0 0.0
  %749 = vmatprep.subr.mxu0 0.0
  %750 = vmatpush1.msra.mxu0 0.0
  %751 = vmatprep.subr.mxu0 0.0
  %752 = vmatpush1.msra.mxu0 0.0
  %753 = vmatprep.subr.mxu0 0.0
  %754 = vmatpush1.msra.mxu0 0.0
  %755 = vmatprep.subr.mxu0 0.0
  %756 = vmatpush1.msra.mxu0 0.0
  %757 = vmatprep.subr.mxu0 0.0
  %758 = vmatpush1.msra.mxu0 0.0
  %759 = vmatprep.subr.mxu0 0.0
  %760 = vmatpush1.msra.mxu0 0.0
  %761 = vmatprep.subr.mxu0 0.0
  %762 = vmatpush1.msra.mxu0 0.0
  %763 = vmatprep.mubr.f32.mxu0 0.0
  %764 = vmatmul.mubr.f32.gmra.mrb[0].mxu0 %v697
  %v765 = vpop.f32.mrb[0].mxu0
  %v766 = vadd.f32 0.0, %v765
  %v767 = vpop.f32.mrb[0].mxu0
  %768 = vdwg.mxu0
  %v769 = vadd.f32 %v695, %v766
  %v770 = vtanh.pop %v769
  %v772 = vsel %vm163, %v770, 0
  %774 = vmatprep.subr.mxu0 0.0
  %775 = vmatpush1.msra.mxu0 %v17
  %776 = vmatprep.subr.mxu0 0.0
  %777 = vmatpush1.msra.mxu0 %v18
  %778 = vmatprep.subr.mxu0 0.0
  %779 = vmatpush1.msra.mxu0 %v19
  %780 = vmatprep.subr.mxu0 0.0
  %781 = vmatpush1.msra.mxu0 %v20
  %782 = vmatprep.subr.mxu0 0.0
  %783 = vmatpush1.msra.mxu0 0.0
  %784 = vmatprep.subr.mxu0 0.0
  %785 = vmatpush1.msra.mxu0 0.0
  %786 = vmatprep.subr.mxu0 0.0
  %787 = vmatpush1.msra.mxu0 0.0
  %788 = vmatprep.subr.mxu0 0.0
  %789 = vmatpush1.msra.mxu0 0.0
  %790 = vmatprep.subr.mxu0 0.0
  %791 = vmatpush1.msra.mxu0 0.0
  %792 = vmatprep.subr.mxu0 0.0
  %793 = vmatpush1.msra.mxu0 0.0
  %794 = vmatprep.subr.mxu0 0.0
  %795 = vmatpush1.msra.mxu0 0.0
  %796 = vmatprep.subr.mxu0 0.0
  %797 = vmatpush1.msra.mxu0 0.0
  %798 = vmatprep.subr.mxu0 0.0
  %799 = vmatpush1.msra.mxu0 0.0
  %800 = vmatprep.subr.mxu0 0.0
  %801 = vmatpush1.msra.mxu0 0.0
  %802 = vmatprep.subr.mxu0 0.0
  %803 = vmatpush1.msra.mxu0 0.0
  %804 = vmatprep.subr.mxu0 0.0
  %805 = vmatpush1.msra.mxu0 0.0
  %806 = vmatprep.subr.mxu0 0.0
  %807 = vmatpush1.msra.mxu0 0.0
  %808 = vmatprep.subr.mxu0 0.0
  %809 = vmatpush1.msra.mxu0 0.0
  %810 = vmatprep.subr.mxu0 0.0
  %811 = vmatpush1.msra.mxu0 0.0
  %812 = vmatprep.subr.mxu0 0.0
  %813 = vmatpush1.msra.mxu0 0.0
  %814 = vmatprep.subr.mxu0 0.0
  %815 = vmatpush1.msra.mxu0 0.0
  %816 = vmatprep.subr.mxu0 0.0
  %817 = vmatpush1.msra.mxu0 0.0
  %818 = vmatprep.subr.mxu0 0.0
  %819 = vmatpush1.msra.mxu0 0.0
  %820 = vmatprep.subr.mxu0 0.0
  %821 = vmatpush1.msra.mxu0 0.0
  %822 = vmatprep.subr.mxu0 0.0
  %823 = vmatpush1.msra.mxu0 0.0
  %824 = vmatprep.subr.mxu0 0.0
  %825 = vmatpush1.msra.mxu0 0.0
  %826 = vmatprep.subr.mxu0 0.0
  %827 = vmatpush1.msra.mxu0 0.0
  %828 = vmatprep.subr.mxu0 0.0
  %829 = vmatpush1.msra.mxu0 0.0
  %830 = vmatprep.subr.mxu0 0.0
  %831 = vmatpush1.msra.mxu0 0.0
  %832 = vmatprep.subr.mxu0 0.0
  %833 = vmatpush1.msra.mxu0 0.0
  %834 = vmatprep.subr.mxu0 0.0
  %835 = vmatpush1.msra.mxu0 0.0
  %836 = vmatprep.subr.mxu0 0.0
  %837 = vmatpush1.msra.mxu0 0.0
  %838 = vmatprep.mubr.f32.mxu0 0.0
  %839 = vmatmul.mubr.f32.gmra.mrb[0].mxu0 %v772
  %v840 = vpop.f32.mrb[0].mxu0
  %v841 = vadd.f32 0.0, %v840
  %v842 = vpop.f32.mrb[0].mxu0
  %843 = vdwg.mxu0
  %v844 = vadd.f32 %v21, %v841
  %v845 = vtanh.pop %v844
  %v847 = vsel %vm163, %v845, 0
  %849 = vmatprep.subr.mxu0 0.0
  %850 = vmatpush1.msra.mxu0 %v17
  %851 = vmatprep.subr.mxu0 0.0
  %852 = vmatpush1.msra.mxu0 %v18
  %853 = vmatprep.subr.mxu0 0.0
  %854 = vmatpush1.msra.mxu0 %v19
  %855 = vmatprep.subr.mxu0 0.0
  %856 = vmatpush1.msra.mxu0 %v20
  %857 = vmatprep.subr.mxu0 0.0
  %858 = vmatpush1.msra.mxu0 0.0
  %859 = vmatprep.subr.mxu0 0.0
  %860 = vmatpush1.msra.mxu0 0.0
  %861 = vmatprep.subr.mxu0 0.0
  %862 = vmatpush1.msra.mxu0 0.0
  %863 = vmatprep.subr.mxu0 0.0
  %864 = vmatpush1.msra.mxu0 0.0
  %865 = vmatprep.subr.mxu0 0.0
  %866 = vmatpush1.msra.mxu0 0.0
  %867 = vmatprep.subr.mxu0 0.0
  %868 = vmatpush1.msra.mxu0 0.0
  %869 = vmatprep.subr.mxu0 0.0
  %870 = vmatpush1.msra.mxu0 0.0
  %871 = vmatprep.subr.mxu0 0.0
  %872 = vmatpush1.msra.mxu0 0.0
  %873 = vmatprep.subr.mxu0 0.0
  %874 = vmatpush1.msra.mxu0 0.0
  %875 = vmatprep.subr.mxu0 0.0
  %876 = vmatpush1.msra.mxu0 0.0
  %877 = vmatprep.subr.mxu0 0.0
  %878 = vmatpush1.msra.mxu0 0.0
  %879 = vmatprep.subr.mxu0 0.0
  %880 = vmatpush1.msra.mxu0 0.0
  %881 = vmatprep.subr.mxu0 0.0
  %882 = vmatpush1.msra.mxu0 0.0
  %883 = vmatprep.subr.mxu0 0.0
  %884 = vmatpush1.msra.mxu0 0.0
  %885 = vmatprep.subr.mxu0 0.0
  %886 = vmatpush1.msra.mxu0 0.0
  %887 = vmatprep.subr.mxu0 0.0
  %888 = vmatpush1.msra.mxu0 0.0
  %889 = vmatprep.subr.mxu0 0.0
  %890 = vmatpush1.msra.mxu0 0.0
  %891 = vmatprep.subr.mxu0 0.0
  %892 = vmatpush1.msra.mxu0 0.0
  %893 = vmatprep.subr.mxu0 0.0
  %894 = vmatpush1.msra.mxu0 0.0
  %895 = vmatprep.subr.mxu0 0.0
  %896 = vmatpush1.msra.mxu0 0.0
  %897 = vmatprep.subr.mxu0 0.0
  %898 = vmatpush1.msra.mxu0 0.0
  %899 = vmatprep.subr.mxu0 0.0
  %900 = vmatpush1.msra.mxu0 0.0
  %901 = vmatprep.subr.mxu0 0.0
  %902 = vmatpush1.msra.mxu0 0.0
  %903 = vmatprep.subr.mxu0 0.0
  %904 = vmatpush1.msra.mxu0 0.0
  %905 = vmatprep.subr.mxu0 0.0
  %906 = vmatpush1.msra.mxu0 0.0
  %907 = vmatprep.subr.mxu0 0.0
  %908 = vmatpush1.msra.mxu0 0.0
  %909 = vmatprep.subr.mxu0 0.0
  %910 = vmatpush1.msra.mxu0 0.0
  %911 = vmatprep.subr.mxu0 0.0
  %912 = vmatpush1.msra.mxu0 0.0
  %913 = vmatprep.mubr.f32.mxu0 0.0
  %914 = vmatmul.mubr.f32.gmra.mrb[0].mxu0 %v847
  %v915 = vpop.f32.mrb[0].mxu0
  %v916 = vadd.f32 0.0, %v915
  %v917 = vpop.f32.mrb[0].mxu0
  %918 = vdwg.mxu0
  %v919 = vadd.f32 %v21, %v916
  %v920 = vtanh.pop %v919
  %v922 = vsel %vm163, %v920, 0
  %924 = vmatprep.subr.mxu0 0.0
  %925 = vmatpush1.msra.mxu0 %v17
  %926 = vmatprep.subr.mxu0 0.0
  %927 = vmatpush1.msra.mxu0 %v18
  %928 = vmatprep.subr.mxu0 0.0
  %929 = vmatpush1.msra.mxu0 %v19
  %930 = vmatprep.subr.mxu0 0.0
  %931 = vmatpush1.msra.mxu0 %v20
  %932 = vmatprep.subr.mxu0 0.0
  %933 = vmatpush1.msra.mxu0 0.0
  %934 = vmatprep.subr.mxu0 0.0
  %935 = vmatpush1.msra.mxu0 0.0
  %936 = vmatprep.subr.mxu0 0.0
  %937 = vmatpush1.msra.mxu0 0.0
  %938 = vmatprep.subr.mxu0 0.0
  %939 = vmatpush1.msra.mxu0 0.0
  %940 = vmatprep.subr.mxu0 0.0
  %941 = vmatpush1.msra.mxu0 0.0
  %942 = vmatprep.subr.mxu0 0.0
  %943 = vmatpush1.msra.mxu0 0.0
  %944 = vmatprep.subr.mxu0 0.0
  %945 = vmatpush1.msra.mxu0 0.0
  %946 = vmatprep.subr.mxu0 0.0
  %947 = vmatpush1.msra.mxu0 0.0
  %948 = vmatprep.subr.mxu0 0.0
  %949 = vmatpush1.msra.mxu0 0.0
  %950 = vmatprep.subr.mxu0 0.0
  %951 = vmatpush1.msra.mxu0 0.0
  %952 = vmatprep.subr.mxu0 0.0
  %953 = vmatpush1.msra.mxu0 0.0
  %954 = vmatprep.subr.mxu0 0.0
  %955 = vmatpush1.msra.mxu0 0.0
  %956 = vmatprep.subr.mxu0 0.0
  %957 = vmatpush1.msra.mxu0 0.0
  %958 = vmatprep.subr.mxu0 0.0
  %959 = vmatpush1.msra.mxu0 0.0
  %960 = vmatprep.subr.mxu0 0.0
  %961 = vmatpush1.msra.mxu0 0.0
  %962 = vmatprep.subr.mxu0 0.0
  %963 = vmatpush1.msra.mxu0 0.0
  %964 = vmatprep.subr.mxu0 0.0
  %965 = vmatpush1.msra.mxu0 0.0
  %966 = vmatprep.subr.mxu0 0.0
  %967 = vmatpush1.msra.mxu0 0.0
  %968 = vmatprep.subr.mxu0 0.0
  %969 = vmatpush1.msra.mxu0 0.0
  %970 = vmatprep.subr.mxu0 0.0
  %971 = vmatpush1.msra.mxu0 0.0
  %972 = vmatprep.subr.mxu0 0.0
  %973 = vmatpush1.msra.mxu0 0.0
  %974 = vmatprep.subr.mxu0 0.0
  %975 = vmatpush1.msra.mxu0 0.0
  %976 = vmatprep.subr.mxu0 0.0
  %977 = vmatpush1.msra.mxu0 0.0
  %978 = vmatprep.subr.mxu0 0.0
  %979 = vmatpush1.msra.mxu0 0.0
  %980 = vmatprep.subr.mxu0 0.0
  %981 = vmatpush1.msra.mxu0 0.0
  %982 = vmatprep.subr.mxu0 0.0
  %983 = vmatpush1.msra.mxu0 0.0
  %984 = vmatprep.subr.mxu0 0.0
  %985 = vmatpush1.msra.mxu0 0.0
  %986 = vmatprep.subr.mxu0 0.0
  %987 = vmatpush1.msra.mxu0 0.0
  %988 = vmatprep.mubr.f32.mxu0 0.0
  %989 = vmatmul.mubr.f32.gmra.mrb[0].mxu0 %v922
  %v990 = vpop.f32.mrb[0].mxu0
  %v991 = vadd.f32 0.0, %v990
  %v992 = vpop.f32.mrb[0].mxu0
  %993 = vdwg.mxu0
  %v994 = vadd.f32 %v21, %v991
  %v995 = vtanh.pop %v994
  %v997 = vsel %vm163, %v995, 0
  %999 = vmatprep.subr.mxu0 0.0
  %1000 = vmatpush1.msra.mxu0 %v17
  %1001 = vmatprep.subr.mxu0 0.0
  %1002 = vmatpush1.msra.mxu0 %v18
  %1003 = vmatprep.subr.mxu0 0.0
  %1004 = vmatpush1.msra.mxu0 %v19
  %1005 = vmatprep.subr.mxu0 0.0
  %1006 = vmatpush1.msra.mxu0 %v20
  %1007 = vmatprep.subr.mxu0 0.0
  %1008 = vmatpush1.msra.mxu0 0.0
  %1009 = vmatprep.subr.mxu0 0.0
  %1010 = vmatpush1.msra.mxu0 0.0
  %1011 = vmatprep.subr.mxu0 0.0
  %1012 = vmatpush1.msra.mxu0 0.0
  %1013 = vmatprep.subr.mxu0 0.0
  %1014 = vmatpush1.msra.mxu0 0.0
  %1015 = vmatprep.subr.mxu0 0.0
  %1016 = vmatpush1.msra.mxu0 0.0
  %1017 = vmatprep.subr.mxu0 0.0
  %1018 = vmatpush1.msra.mxu0 0.0
  %1019 = vmatprep.subr.mxu0 0.0
  %1020 = vmatpush1.msra.mxu0 0.0
  %1021 = vmatprep.subr.mxu0 0.0
  %1022 = vmatpush1.msra.mxu0 0.0
  %1023 = vmatprep.subr.mxu0 0.0
  %1024 = vmatpush1.msra.mxu0 0.0
  %1025 = vmatprep.subr.mxu0 0.0
  %1026 = vmatpush1.msra.mxu0 0.0
  %1027 = vmatprep.subr.mxu0 0.0
  %1028 = vmatpush1.msra.mxu0 0.0
  %1029 = vmatprep.subr.mxu0 0.0
  %1030 = vmatpush1.msra.mxu0 0.0
  %1031 = vmatprep.subr.mxu0 0.0
  %1032 = vmatpush1.msra.mxu0 0.0
  %1033 = vmatprep.subr.mxu0 0.0
  %1034 = vmatpush1.msra.mxu0 0.0
  %1035 = vmatprep.subr.mxu0 0.0
  %1036 = vmatpush1.msra.mxu0 0.0
  %1037 = vmatprep.subr.mxu0 0.0
  %1038 = vmatpush1.msra.mxu0 0.0
  %1039 = vmatprep.subr.mxu0 0.0
  %1040 = vmatpush1.msra.mxu0 0.0
  %1041 = vmatprep.subr.mxu0 0.0
  %1042 = vmatpush1.msra.mxu0 0.0
  %1043 = vmatprep.subr.mxu0 0.0
  %1044 = vmatpush1.msra.mxu0 0.0
  %1045 = vmatprep.subr.mxu0 0.0
  %1046 = vmatpush1.msra.mxu0 0.0
  %1047 = vmatprep.subr.mxu0 0.0
  %1048 = vmatpush1.msra.mxu0 0.0
  %1049 = vmatprep.subr.mxu0 0.0
  %1050 = vmatpush1.msra.mxu0 0.0
  %1051 = vmatprep.subr.mxu0 0.0
  %1052 = vmatpush1.msra.mxu0 0.0
  %1053 = vmatprep.subr.mxu0 0.0
  %1054 = vmatpush1.msra.mxu0 0.0
  %1055 = vmatprep.subr.mxu0 0.0
  %1056 = vmatpush1.msra.mxu0 0.0
  %1057 = vmatprep.subr.mxu0 0.0
  %1058 = vmatpush1.msra.mxu0 0.0
  %1059 = vmatprep.subr.mxu0 0.0
  %1060 = vmatpush1.msra.mxu0 0.0
  %1061 = vmatprep.subr.mxu0 0.0
  %1062 = vmatpush1.msra.mxu0 0.0
  %1063 = vmatprep.mubr.f32.mxu0 0.0
  %1064 = vmatmul.mubr.f32.gmra.mrb[0].mxu0 %v997
  %v1065 = vpop.f32.mrb[0].mxu0
  %v1066 = vadd.f32 0.0, %v1065
  %v1067 = vpop.f32.mrb[0].mxu0
  %1068 = vdwg.mxu0
  %v1069 = vadd.f32 %v21, %v1066
  %v1070 = vtanh.pop %v1069
  %v1071 = vlaneseq
  %v1072 = vshrl.u32 %v1071, 7
  %v1073 = vsub.s32 0, %v1072
  %v1074 = vrot.slane %v27, %v1073
  %v1076 = vsel %vm163, %v1070, 0
  %1078 = vmatprep.subr.mxu0 0.0
  %1079 = vmatpush1.msra.mxu0 %v23
  %1080 = vmatprep.subr.mxu0 0.0
  %1081 = vmatpush1.msra.mxu0 %v24
  %1082 = vmatprep.subr.mxu0 0.0
  %1083 = vmatpush1.msra.mxu0 %v25
  %1084 = vmatprep.subr.mxu0 0.0
  %1085 = vmatpush1.msra.mxu0 %v26
  %1086 = vmatprep.subr.mxu0 0.0
  %1087 = vmatpush1.msra.mxu0 0.0
  %1088 = vmatprep.subr.mxu0 0.0
  %1089 = vmatpush1.msra.mxu0 0.0
  %1090 = vmatprep.subr.mxu0 0.0
  %1091 = vmatpush1.msra.mxu0 0.0
  %1092 = vmatprep.subr.mxu0 0.0
  %1093 = vmatpush1.msra.mxu0 0.0
  %1094 = vmatprep.subr.mxu0 0.0
  %1095 = vmatpush1.msra.mxu0 0.0
  %1096 = vmatprep.subr.mxu0 0.0
  %1097 = vmatpush1.msra.mxu0 0.0
  %1098 = vmatprep.subr.mxu0 0.0
  %1099 = vmatpush1.msra.mxu0 0.0
  %1100 = vmatprep.subr.mxu0 0.0
  %1101 = vmatpush1.msra.mxu0 0.0
  %1102 = vmatprep.subr.mxu0 0.0
  %1103 = vmatpush1.msra.mxu0 0.0
  %1104 = vmatprep.subr.mxu0 0.0
  %1105 = vmatpush1.msra.mxu0 0.0
  %1106 = vmatprep.subr.mxu0 0.0
  %1107 = vmatpush1.msra.mxu0 0.0
  %1108 = vmatprep.subr.mxu0 0.0
  %1109 = vmatpush1.msra.mxu0 0.0
  %1110 = vmatprep.subr.mxu0 0.0
  %1111 = vmatpush1.msra.mxu0 0.0
  %1112 = vmatprep.subr.mxu0 0.0
  %1113 = vmatpush1.msra.mxu0 0.0
  %1114 = vmatprep.subr.mxu0 0.0
  %1115 = vmatpush1.msra.mxu0 0.0
  %1116 = vmatprep.subr.mxu0 0.0
  %1117 = vmatpush1.msra.mxu0 0.0
  %1118 = vmatprep.subr.mxu0 0.0
  %1119 = vmatpush1.msra.mxu0 0.0
  %1120 = vmatprep.subr.mxu0 0.0
  %1121 = vmatpush1.msra.mxu0 0.0
  %1122 = vmatprep.subr.mxu0 0.0
  %1123 = vmatpush1.msra.mxu0 0.0
  %1124 = vmatprep.subr.mxu0 0.0
  %1125 = vmatpush1.msra.mxu0 0.0
  %1126 = vmatprep.subr.mxu0 0.0
  %1127 = vmatpush1.msra.mxu0 0.0
  %1128 = vmatprep.subr.mxu0 0.0
  %1129 = vmatpush1.msra.mxu0 0.0
  %1130 = vmatprep.subr.mxu0 0.0
  %1131 = vmatpush1.msra.mxu0 0.0
  %1132 = vmatprep.subr.mxu0 0.0
  %1133 = vmatpush1.msra.mxu0 0.0
  %1134 = vmatprep.subr.mxu0 0.0
  %1135 = vmatpush1.msra.mxu0 0.0
  %1136 = vmatprep.subr.mxu0 0.0
  %1137 = vmatpush1.msra.mxu0 0.0
  %1138 = vmatprep.subr.mxu0 0.0
  %1139 = vmatpush1.msra.mxu0 0.0
  %1140 = vmatprep.subr.mxu0 0.0
  %1141 = vmatpush1.msra.mxu0 0.0
  %1142 = vmatprep.mubr.f32.mxu0 0.0
  %1143 = vmatmul.mubr.f32.gmra.mrb[0].mxu0 %v847
  %v1144 = vpop.f32.mrb[0].mxu0
  %v1145 = vadd.f32 %v1074, %v1144
  %v1146 = vpop.f32.mrb[0].mxu0
  %1147 = vmatprep.mubr.f32.mxu0 0.0
  %1148 = vmatmul.mubr.f32.gmra.mrb[0].mxu0 %v922
  %v1149 = vpop.f32.mrb[0].mxu0
  %v1150 = vadd.f32 %v1074, %v1149
  %v1151 = vpop.f32.mrb[0].mxu0
  %1152 = vmatprep.mubr.f32.mxu0 0.0
  %1153 = vmatmul.mubr.f32.gmra.mrb[0].mxu0 %v997
  %v1154 = vpop.f32.mrb[0].mxu0
  %v1155 = vadd.f32 %v1074, %v1154
  %v1156 = vpop.f32.mrb[0].mxu0
  %1157 = vmatprep.mubr.f32.mxu0 0.0
  %1158 = vmatmul.mubr.f32.gmra.mrb[0].mxu0 %v1076
  %v1159 = vpop.f32.mrb[0].mxu0
  %v1160 = vadd.f32 %v1074, %v1159
  %v1161 = vpop.f32.mrb[0].mxu0
  %1162 = vdwg.mxu0
  %vm1163 = vcmask 15360
  %1164 = vst.msk [vmem:[%s1] sm:$0xff] %vm1163, %v1145
  %1165 = vst.msk [vmem:[%s1 + $0x8] sm:$0xff] %vm1163, %v1150
  %1166 = vst.msk [vmem:[%s1 + $0x10] sm:$0xff] %vm1163, %v1155
  %1167 = vst.msk [vmem:[%s1 + $0x18] sm:$0xff] %vm1163, %v1160
  // Predicated region
  $region6: #{rnn_recursive_forward.1} parent=0 // pred_check
    _
  $region7: #{rnn_recursive_forward.1} parent=0 // pred_check_branch
    %1169 = sbr.rel (0) target = $region9
  $region8: #{rnn_recursive_forward.1} parent=0 // pred_region
    _
  $region9: #{rnn_recursive_forward.1} parent=0 // pred_fallthru
    _
  // Predicated region
  $region10: #{rnn_recursive_forward.1} parent=0 // pred_check
    _
  $region11: #{rnn_recursive_forward.1} parent=0 // pred_check_branch
    %1171 = sbr.rel (0) target = $region13
  $region12: #{rnn_recursive_forward.1} parent=0 // pred_region
    _
  $region13: #{rnn_recursive_forward.1} parent=0 // pred_fallthru
    _

</llo_original>
